<compile_context>
chip_gen: v7x
topology: tpu7x:2x2x1
jax: 0.10.0
libtpu: 0.0.40
codegen_flags: <defaults>
</compile_context>

<pallas_src>
import functools

import jax
import jax.numpy as jnp
from jax.experimental import pallas as pl
from jax.experimental.pallas import tpu as pltpu


def _hashproj_kernel(x_ref, sel_ref, sgn_ref, o_ref, *,
                     n_valid_last, compute_dtype, precision):
    """Accumulate one (batch-tile, K-tile) step of x @ proj.T into o_ref."""
    k = pl.program_id(1)
    nk = pl.num_programs(1)

    @pl.when(k == 0)
    def _():
        o_ref[...] = jnp.zeros_like(o_ref)

    out_feat = o_ref.shape[-1]
    tk = sel_ref.shape[-1]

    sel = sel_ref[...]                                # (1, tk) int32
    sgn = sgn_ref[...].astype(compute_dtype)          # (1, tk)
    x_tile = x_ref[...].astype(compute_dtype)         # (tb, tk); no-op if dtypes match

    rows = jax.lax.broadcasted_iota(jnp.int32, (out_feat, tk), 0)
    onehot = rows == sel                              # (out_feat, tk) bool

    if n_valid_last is not None:
        # Ragged last K tile: zero the contributions of the padded columns on
        # BOTH operands so stale-VMEM inf/NaN garbage cannot leak into the sum.
        col = jax.lax.broadcasted_iota(jnp.int32, (1, tk), 1)
        valid = jnp.where(k == nk - 1, n_valid_last, tk)
        col_ok = col < valid                          # (1, tk)
        onehot = jnp.logical_and(onehot, col_ok)
        x_tile = jnp.where(col_ok, x_tile, jnp.zeros((), compute_dtype))

    # Signed one-hot projection tile rebuilt on-chip, directly in the compute
    # dtype (entries are exactly +-1 / 0, so no numeric change).
    p_tile = jnp.where(onehot, sgn, jnp.zeros((), compute_dtype))

    # (tb, tk) x (out_feat, tk) contracted over tk -> (tb, out_feat), f32
    # accumulation directly into the resident output block (no scratch).
    o_ref[...] += jax.lax.dot_general(
        x_tile, p_tile,
        dimension_numbers=(((1,), (1,)), ((), ())),
        preferred_element_type=jnp.float32,
        precision=precision,
    )


def _round_up(x, m):
    return (x + m - 1) // m * m


def _vmem_budgets():
    """(vmem_limit_bytes, K-tile working-set budget) derived per generation.
    Leaves 16 MiB of physical headroom and ~12 MiB inside the scoped limit for
    output blocks / compiler scratch."""
    try:
        vmem_cap = pltpu.get_tpu_info().vmem_capacity_bytes
    except Exception:                          # not a TPU / API unavailable
        vmem_cap = 64 * 1024 * 1024            # most conservative (v7x)
    limit = min(vmem_cap - 16 * 1024 * 1024, 96 * 1024 * 1024)
    limit = max(limit, 32 * 1024 * 1024)
    return limit, limit - 12 * 1024 * 1024


def _choose_b_tile(batch):
    """Largest multiple-of-8 divisor of `batch` that is <= 512 and leaves at
    least two batch steps (so the 'parallel' axis can shard across v7x's two
    TensorCores); falls back to the whole batch for small/awkward B."""
    best = None
    d = 8
    while d <= min(batch // 2, 512):
        if batch % d == 0:
            best = d
        d += 8
    return best if best is not None else batch


def _choose_k_tile(n, tb, out_feat, x_itemsize, compute_itemsize, budget_bytes):
    """Largest K tile (multiple of 128) whose VMEM working set -- double-
    buffered input blocks plus in-kernel temporaries (possible x cast copy,
    iota / mask / one-hot tiles) -- stays within `budget_bytes`."""
    bytes_per_k = (
        2 * (tb * x_itemsize + 4 + 4)               # double-buffered x, sel, sgn
        + tb * compute_itemsize                     # in-kernel x cast copy
        + out_feat * (4 + 4 + compute_itemsize)     # iota, mask/where, one-hot
    )
    tk = (budget_bytes // bytes_per_k) // 128 * 128
    tk = max(128, min(tk, _round_up(n, 128)))
    return tk


def rand_hash_proj_forward(x, selector, sign, out_feat, *, tb=None, tk=None):
    """x: (B, N); selector: (N,) int32 in [0, out_feat); sign: (N,) in {-1,+1}.
    Returns (B, out_feat) float32 = x @ proj.T, where proj is the signed
    one-hot projection implied by (selector, sign)."""
    B, N = x.shape
    assert selector.shape == (N,) and sign.shape == (N,)

    # bf16 inputs stay bf16 (halves the dominant HBM stream); everything else
    # is computed in f32 for parity with the PyTorch f32 reference.  We never
    # insert a wrapper-side cast (that would be an extra un-fused HBM pass).
    compute_dtype = jnp.bfloat16 if x.dtype == jnp.bfloat16 else jnp.float32
    precision = (jax.lax.Precision.HIGHEST if compute_dtype == jnp.float32
                 else jax.lax.Precision.DEFAULT)

    vmem_limit, vmem_budget = _vmem_budgets()

    if tb is None:
        tb = _choose_b_tile(B)
    assert B % tb == 0 and (tb % 8 == 0 or tb == B)
    if tk is None:
        tk = _choose_k_tile(N, tb, out_feat, x.dtype.itemsize,
                            jnp.dtype(compute_dtype).itemsize, vmem_budget)
    assert tk % 128 == 0

    k_steps = pl.cdiv(N, tk)
    rem = N % tk
    n_valid_last = rem if rem != 0 else None      # ragged last K tile?

    sel2 = selector.reshape(1, N).astype(jnp.int32)
    sgn2 = sign.reshape(1, N).astype(jnp.float32)

    kernel = functools.partial(
        _hashproj_kernel,
        n_valid_last=n_valid_last,
        compute_dtype=compute_dtype,
        precision=precision,
    )

    grid_spec = pltpu.PrefetchScalarGridSpec(
        num_scalar_prefetch=0,
        grid=(B // tb, k_steps),
        in_specs=[
            pl.BlockSpec((tb, tk), lambda b, k: (b, k)),
            pl.BlockSpec((1, tk), lambda b, k: (0, k)),
            pl.BlockSpec((1, tk), lambda b, k: (0, k)),
        ],
        out_specs=pl.BlockSpec((tb, out_feat), lambda b, k: (b, 0)),
    )

    cost = pl.CostEstimate(
        flops=2 * B * out_feat * N,
        transcendentals=0,
        bytes_accessed=(B * N * x.dtype.itemsize       # x streamed once
                        + (B // tb) * N * 8            # sel+sgn per batch tile
                        + B * out_feat * 4),           # f32 output
    )

    return pl.pallas_call(
        kernel,
        out_shape=jax.ShapeDtypeStruct((B, out_feat), jnp.float32),
        grid_spec=grid_spec,
        compiler_params=pltpu.CompilerParams(
            dimension_semantics=("parallel", "arbitrary"),
            vmem_limit_bytes=vmem_limit,
        ),
        cost_estimate=cost,
    )(x, sel2, sgn2)


def make_rand_hash_params(key, out_feat, in_feat):
    """Deterministically build the compact hash parameters, mirroring
    RandHashProj._get_dense_ext: each input index maps to one output row
    (selector) with a +-1 sign (binary)."""
    k_sel, k_bin = jax.random.split(key)
    selector = jax.random.randint(k_sel, (in_feat,), 0, out_feat,
                                  dtype=jnp.int32)
    sign = (jax.random.randint(k_bin, (in_feat,), 0, 2, dtype=jnp.int32)
            * 2 - 1).astype(jnp.float32)
    return selector, sign


def dense_proj(selector, sign, out_feat, dtype=jnp.float32):
    """Dense (out_feat, N) projection -- reference only; never fed to TPU."""
    rows = jnp.arange(out_feat, dtype=selector.dtype)[:, None]
    return (selector[None, :] == rows).astype(dtype) * sign[None, :].astype(dtype)


if __name__ == "__main__":
    key = jax.random.PRNGKey(0)
    OUT_FEAT = 16  # fixed output feature size

    # --- Case 1: f32 input, single clean K tile (f32-parity path). ---------
    k_proj, k_x, key = jax.random.split(key, 3)
    B1, N1 = 8, 256
    sel1, sgn1 = make_rand_hash_params(k_proj, OUT_FEAT, N1)
    x1 = jax.random.normal(k_x, (B1, N1), dtype=jnp.float32)

    y1 = jax.block_until_ready(rand_hash_proj_forward(x1, sel1, sgn1, OUT_FEAT))
    ref1 = jnp.matmul(x1, dense_proj(sel1, sgn1, OUT_FEAT).T,
                      precision=jax.lax.Precision.HIGHEST)
    assert y1.shape == (B1, OUT_FEAT)
    assert jnp.allclose(y1, ref1, atol=1e-3, rtol=1e-3)

    # --- Case 2: bf16 input, ragged N, multiple batch and K steps. ---------
    k_proj, k_x = jax.random.split(key)
    B2, N2 = 16, 200            # N2 not a multiple of 128 -> ragged last K tile
    sel2, sgn2 = make_rand_hash_params(k_proj, OUT_FEAT, N2)
    x2 = jax.random.normal(k_x, (B2, N2), dtype=jnp.float32).astype(jnp.bfloat16)

    y2 = jax.block_until_ready(
        rand_hash_proj_forward(x2, sel2, sgn2, OUT_FEAT, tk=128))
    ref2 = jnp.matmul(x2.astype(jnp.float32),
                      dense_proj(sel2, sgn2, OUT_FEAT).T,
                      precision=jax.lax.Precision.HIGHEST)
    assert y2.shape == (B2, OUT_FEAT)
    assert jnp.allclose(y2, ref2, atol=1e-2, rtol=1e-2)

    print("KERNEL_OK")
</pallas_src>

<mosaic_0001>
module attributes {stable_mosaic.version = 11 : i64} {
  func.func @_hashproj_kernel(%arg0: i32, %arg1: i32, %arg2: memref<8x256xf32, #tpu.memory_space<vmem>>, %arg3: memref<1x256xi32, #tpu.memory_space<vmem>>, %arg4: memref<1x256xf32, #tpu.memory_space<vmem>>, %arg5: memref<8x16xf32, #tpu.memory_space<vmem>>) attributes {dimension_semantics = [#tpu.dimension_semantics<parallel>, #tpu.dimension_semantics<arbitrary>], iteration_bounds = array<i64: 1, 1>, scalar_prefetch = 0 : i64, scratch_operands = 0 : i64, tpu.core_type = #tpu.core_type<tc>, window_params = [{transform_indices = @transform_0, window_bounds = array<i64: 8, 256>}, {transform_indices = @transform_1, window_bounds = array<i64: 1, 256>}, {transform_indices = @transform_2, window_bounds = array<i64: 1, 256>}, {transform_indices = @transform_3, window_bounds = array<i64: 8, 16>}]} {
    %c0_i32 = arith.constant 0 : i32
    %0 = arith.cmpi eq, %arg1, %c0_i32 : i32
    %1 = arith.extui %0 : i1 to i32
    %c0_i32_0 = arith.constant 0 : i32
    %2 = arith.cmpi ne, %1, %c0_i32_0 : i32
    scf.if %2 {
      %cst_11 = arith.constant 0.000000e+00 : f32
      %17 = vector.broadcast %cst_11 : f32 to vector<8x16xf32>
      %c0_12 = arith.constant 0 : index
      %c0_13 = arith.constant 0 : index
      %18 = vector.load %arg5[%c0_12, %c0_13] : memref<8x16xf32, #tpu.memory_space<vmem>>, vector<8x16xf32>
      tpu.vector_store %arg5[%c0_12, %c0_13], %17 {strides = array<i32>} : memref<8x16xf32, #tpu.memory_space<vmem>>, vector<8x16xf32>,
    } else {
    }
    %c0 = arith.constant 0 : index
    %c0_1 = arith.constant 0 : index
    %3 = vector.load %arg3[%c0, %c0_1] : memref<1x256xi32, #tpu.memory_space<vmem>>, vector<1x256xi32>
    %c0_2 = arith.constant 0 : index
    %c0_3 = arith.constant 0 : index
    %4 = vector.load %arg4[%c0_2, %c0_3] : memref<1x256xf32, #tpu.memory_space<vmem>>, vector<1x256xf32>
    %c0_4 = arith.constant 0 : index
    %c0_5 = arith.constant 0 : index
    %5 = vector.load %arg2[%c0_4, %c0_5] : memref<8x256xf32, #tpu.memory_space<vmem>>, vector<8x256xf32>
    %6 = tpu.iota {dimensions = array<i32: 0>} : vector<16x256xi32>
    %7 = vector.broadcast %3 : vector<1x256xi32> to vector<16x256xi32>
    %8 = arith.cmpi eq, %6, %7 : vector<16x256xi32>
    %cst = arith.constant 0.000000e+00 : f32
    %9 = vector.shape_cast %4 : vector<1x256xf32> to vector<1x256xf32>
    %10 = vector.broadcast %9 : vector<1x256xf32> to vector<16x256xf32>
    %11 = vector.broadcast %cst : f32 to vector<16x256xf32>
    %12 = arith.select %8, %10, %11 : vector<16x256xi1>, vector<16x256xf32>
    %c0_6 = arith.constant 0 : index
    %c0_7 = arith.constant 0 : index
    %13 = vector.load %arg5[%c0_6, %c0_7] : memref<8x16xf32, #tpu.memory_space<vmem>>, vector<8x16xf32>
    %cst_8 = arith.constant dense<0.000000e+00> : vector<8x16xf32>
    %14 = tpu.matmul %5, %12, %cst_8 {dimension_numbers = #tpu.dot_dimension_numbers<[1], [1], [0], [0], [0, 0, 1, 0], [], []>, precision = #tpu.contract_precision<fp32>} : vector<8x256xf32>, vector<16x256xf32>, vector<8x16xf32> -> vector<8x16xf32>
    %15 = arith.addf %13, %14 : vector<8x16xf32>
    %c0_9 = arith.constant 0 : index
    %c0_10 = arith.constant 0 : index
    %16 = vector.load %arg5[%c0_9, %c0_10] : memref<8x16xf32, #tpu.memory_space<vmem>>, vector<8x16xf32>
    tpu.vector_store %arg5[%c0_9, %c0_10], %15 {strides = array<i32>} : memref<8x16xf32, #tpu.memory_space<vmem>>, vector<8x16xf32>,
    return
  }
  func.func @transform_0(%arg0: i32, %arg1: i32) -> (i32, i32) {
    %c0_i32 = arith.constant 0 : i32
    return %arg0, %arg1 : i32, i32
  }
  func.func @transform_1(%arg0: i32, %arg1: i32) -> (i32, i32) {
    %c0_i32 = arith.constant 0 : i32
    %c0_i32_0 = arith.constant 0 : i32
    return %c0_i32, %arg1 : i32, i32
  }
  func.func @transform_2(%arg0: i32, %arg1: i32) -> (i32, i32) {
    %c0_i32 = arith.constant 0 : i32
    %c0_i32_0 = arith.constant 0 : i32
    return %c0_i32, %arg1 : i32, i32
  }
  func.func @transform_3(%arg0: i32, %arg1: i32) -> (i32, i32) {
    %c0_i32 = arith.constant 0 : i32
    %c0_i32_0 = arith.constant 0 : i32
    return %arg0, %c0_i32 : i32, i32
  }
}

</mosaic_0001>

<llo_original>
// kernel: tpu_custom_call.1
$region0: #{tpu_custom_call.1}
  #allocation0 [shape = 'u32[]', space=smem, size = 0x4, offset = 0x4, fixed_abs, tag = 'smem constant byte address 0x4 - core index']
  #allocation1 [shape = 'u32[144,128]{1,0:T(1,128)}', space=vmem, size = 0x12000, scoped, tag = 'internal scratch']
  %s0 = inlined_call_operand.hbm [shape: f32[8,256], index: 0, kind: input, shape index: {}]
  %s1 = inlined_call_operand.vmem [shape: s32[1,256], index: 1, kind: input, shape index: {}]
  %s2 = inlined_call_operand.vmem [shape: f32[1,256], index: 2, kind: input, shape index: {}]
  %s3 = inlined_call_operand.hbm [shape: f32[8,16], index: 3, kind: output, shape index: {}]
  %s4 = sld [smem:[#allocation0]]
  $region30: #{tpu_custom_call.1} parent=0
    _
  %s6 = ssub.s32 1, %s4
  %s7 = scalar_select 0, %s6, %s4
  $region1: #{tpu_custom_call.1} parent=0
    #allocation2 [shape = 'u8[8192]{0}', space=vmem, size = 0x2000, scoped, tag = 'input window, operand 0, single buffered']
    #allocation3 [shape = 's32[1]{0}', space=sflag, size = 0x4, scoped, tag = 'scoped memory for tpu_custom_call.1']
    #allocation4 [shape = 's32[1]{0}', space=sflag, size = 0x4, scoped, tag = 'scoped memory for tpu_custom_call.1']
    #allocation5 [shape = 'u8[4096]{0}', space=vmem, size = 0x1000, scoped, tag = 'output window, operand 0, single buffered']
    %8 = vsyncpa [#allocation3], 0
    %9 = vsyncpa [#allocation4], 0
    // Predicated region
    $region2: #{tpu_custom_call.1} parent=1 // pred_check
      _
    $region3: #{tpu_custom_call.1} parent=1 // pred_check_branch
      %11 = sbr.rel (0) target = $region5
    $region4: #{tpu_custom_call.1} parent=1 // pred_region
      %s13 = ssub.s32 256, 256
      %14 = vsyncadd [#allocation3], %s13
      %s16 = sshll.u32 [#allocation2], 4
      %s17 = int_to_ptr.vmem [resolvable:$true] %s16
      %19 = dma.hbm_to_vmem [thread:$0]  %s0, 256, %s17, [#allocation3]
    $region5: #{tpu_custom_call.1} parent=1 // pred_fallthru
      _
    // Predicated region
    $region6: #{tpu_custom_call.1} parent=1 // pred_check
      _
    $region7: #{tpu_custom_call.1} parent=1 // pred_check_branch
      %21 = sbr.rel (0) target = $region9
    $region8: #{tpu_custom_call.1} parent=1 // pred_region
      _
    $region9: #{tpu_custom_call.1} parent=1 // pred_fallthru
      _
    // Predicated region
    $region10: #{tpu_custom_call.1} parent=1 // pred_check
      _
    $region11: #{tpu_custom_call.1} parent=1 // pred_check_branch
      %23 = sbr.rel (0) target = $region13
    $region12: #{tpu_custom_call.1} parent=1 // pred_region
      _
    $region13: #{tpu_custom_call.1} parent=1 // pred_fallthru
      _
    // Predicated region
    $region14: #{tpu_custom_call.1} parent=1 // pred_check
      _
    $region15: #{tpu_custom_call.1} parent=1 // pred_check_branch
      %25 = sbr.rel (0) target = $region17
    $region16: #{tpu_custom_call.1} parent=1 // pred_region
      %26 = dma.done [#allocation3], 256
    $region17: #{tpu_custom_call.1} parent=1 // pred_fallthru
      _
    %p27 = scmp.eq.s32.totalorder 0, 0
    // Predicated region
    $region18: #{tpu_custom_call.1} parent=1 // pred_check
      %p28 = pneg %p27
    $region19: #{tpu_custom_call.1} parent=1 // pred_check_branch
      %30 = sbr.rel (%p28) target = $region21
    $region20: #{tpu_custom_call.1} parent=1 // pred_region
      %vm31 = vcmask 130048
      %32 = vst.msk [vmem:[#allocation5] sm:$0xff] %vm31, 0.0
    $region21: #{tpu_custom_call.1} parent=1 // pred_fallthru
      _
    %v33 = vld [vmem:[%s1] sm:$0x3]
    %v34 = vld [vmem:[%s2] sm:$0x3]
    %v35 = vld [vmem:[#allocation2] sm:$0xff]
    %v36 = vld [vmem:[#allocation2 + $0x8] sm:$0xff]
    %v37 = vlaneseq
    %v38 = vshrl.u32 %v37, 7
    %v39 = vadd.s32 %v38, 8
    %v40 = vlaneseq
    %v41 = vshrl.u32 %v40, 7
    %v42 = vsub.s32 0, %v41
    %v43 = vrot.slane %v33, %v42
    %v44 = vlaneseq
    %v45 = vshrl.u32 %v44, 7
    %v46 = vsub.s32 1, %v45
    %v47 = vrot.slane %v33, %v46
    %vm48 = vcmp.eq.s32.totalorder %v38, %v43
    %vm49 = vcmp.eq.s32.totalorder %v38, %v47
    %vm50 = vcmp.eq.s32.totalorder %v39, %v43
    %vm51 = vcmp.eq.s32.totalorder %v39, %v47
    %v53 = vlaneseq
    %v54 = vshrl.u32 %v53, 7
    %v55 = vsub.s32 0, %v54
    %v56 = vrot.slane %v34, %v55
    %v57 = vlaneseq
    %v58 = vshrl.u32 %v57, 7
    %v59 = vsub.s32 1, %v58
    %v60 = vrot.slane %v34, %v59
    %v63 = vsel %vm48, %v56, 0.0
    %v64 = vsel %vm49, %v60, 0.0
    %v65 = vsel %vm50, %v56, 0.0
    %v66 = vsel %vm51, %v60, 0.0
    %v67 = vld [vmem:[#allocation5] sm:$0xff]
    %v68 = vand.u32 %v64, 4294901760
    %69 = vmatprep.subr.mxu0 %v68
    %v70 = vand.u32 %v63, 4294901760
    %71 = vmatpush1.xpose.msra.mxu0 %v70
    %v72 = vand.u32 %v66, 4294901760
    %73 = vmatprep.subr.mxu0 %v72
    %v74 = vand.u32 %v65, 4294901760
    %75 = vmatpush1.xpose.msra.mxu0 %v74
    %76 = vmatprep.subr.mxu0 0.0
    %77 = vmatpush1.xpose.msra.mxu0 0.0
    %78 = vmatprep.subr.mxu0 0.0
    %79 = vmatpush1.xpose.msra.mxu0 0.0
    %80 = vmatprep.subr.mxu0 0.0
    %81 = vmatpush1.xpose.msra.mxu0 0.0
    %82 = vmatprep.subr.mxu0 0.0
    %83 = vmatpush1.xpose.msra.mxu0 0.0
    %84 = vmatprep.subr.mxu0 0.0
    %85 = vmatpush1.xpose.msra.mxu0 0.0
    %86 = vmatprep.subr.mxu0 0.0
    %87 = vmatpush1.xpose.msra.mxu0 0.0
    %88 = vmatprep.subr.mxu0 0.0
    %89 = vmatpush1.xpose.msra.mxu0 0.0
    %90 = vmatprep.subr.mxu0 0.0
    %91 = vmatpush1.xpose.msra.mxu0 0.0
    %92 = vmatprep.subr.mxu0 0.0
    %93 = vmatpush1.xpose.msra.mxu0 0.0
    %94 = vmatprep.subr.mxu0 0.0
    %95 = vmatpush1.xpose.msra.mxu0 0.0
    %96 = vmatprep.subr.mxu0 0.0
    %97 = vmatpush1.xpose.msra.mxu0 0.0
    %98 = vmatprep.subr.mxu0 0.0
    %99 = vmatpush1.xpose.msra.mxu0 0.0
    %100 = vmatprep.subr.mxu0 0.0
    %101 = vmatpush1.xpose.msra.mxu0 0.0
    %102 = vmatprep.subr.mxu0 0.0
    %103 = vmatpush1.xpose.msra.mxu0 0.0
    %104 = vmatprep.subr.mxu0 0.0
    %105 = vmatpush1.xpose.msra.mxu0 0.0
    %106 = vmatprep.subr.mxu0 0.0
    %107 = vmatpush1.xpose.msra.mxu0 0.0
    %108 = vmatprep.subr.mxu0 0.0
    %109 = vmatpush1.xpose.msra.mxu0 0.0
    %110 = vmatprep.subr.mxu0 0.0
    %111 = vmatpush1.xpose.msra.mxu0 0.0
    %112 = vmatprep.subr.mxu0 0.0
    %113 = vmatpush1.xpose.msra.mxu0 0.0
    %114 = vmatprep.subr.mxu0 0.0
    %115 = vmatpush1.xpose.msra.mxu0 0.0
    %116 = vmatprep.subr.mxu0 0.0
    %117 = vmatpush1.xpose.msra.mxu0 0.0
    %118 = vmatprep.subr.mxu0 0.0
    %119 = vmatpush1.xpose.msra.mxu0 0.0
    %120 = vmatprep.subr.mxu0 0.0
    %121 = vmatpush1.xpose.msra.mxu0 0.0
    %122 = vmatprep.subr.mxu0 0.0
    %123 = vmatpush1.xpose.msra.mxu0 0.0
    %124 = vmatprep.subr.mxu0 0.0
    %125 = vmatpush1.xpose.msra.mxu0 0.0
    %126 = vmatprep.subr.mxu0 0.0
    %127 = vmatpush1.xpose.msra.mxu0 0.0
    %128 = vmatprep.subr.mxu0 0.0
    %129 = vmatpush1.xpose.msra.mxu0 0.0
    %130 = vmatprep.subr.mxu0 0.0
    %131 = vmatpush1.xpose.msra.mxu0 0.0
    %132 = vmatprep.subr.mxu0 0.0
    %133 = vmatpush1.xpose.msra.mxu0 0.0
    %134 = vmatprep.subr.mxu0 0.0
    %135 = vmatpush1.xpose.msra.mxu0 0.0
    %v136 = vand.u32 %v36, 4294901760
    %v137 = vsub.f32 %v36, %v136
    %v138 = vand.u32 %v137, 4294901760
    %v139 = vsub.f32 %v137, %v138
    %v140 = vand.u32 %v139, 4294901760
    %141 = vmatprep.mubr.f32.mxu0 %v140
    %v142 = vand.u32 %v35, 4294901760
    %v143 = vsub.f32 %v35, %v142
    %v144 = vand.u32 %v143, 4294901760
    %v145 = vsub.f32 %v143, %v144
    %v146 = vand.u32 %v145, 4294901760
    %147 = vmatmul.mubr.f32.gmra.mrb[0].mxu0 %v146
    %v148 = vpop.f32.mrb[0].mxu0
    %v149 = vadd.f32 0.0, %v148
    %v150 = vpop.f32.mrb[0].mxu0
    %151 = vdwg.mxu0
    %v152 = vand.u32 %v64, 4294901760
    %v153 = vsub.f32 %v64, %v152
    %v154 = vand.u32 %v153, 4294901760
    %v155 = vsub.f32 %v153, %v154
    %v156 = vand.u32 %v155, 4294901760
    %157 = vmatprep.subr.mxu0 %v156
    %v158 = vand.u32 %v63, 4294901760
    %v159 = vsub.f32 %v63, %v158
    %v160 = vand.u32 %v159, 4294901760
    %v161 = vsub.f32 %v159, %v160
    %v162 = vand.u32 %v161, 4294901760
    %163 = vmatpush1.xpose.msra.mxu0 %v162
    %v164 = vand.u32 %v66, 4294901760
    %v165 = vsub.f32 %v66, %v164
    %v166 = vand.u32 %v165, 4294901760
    %v167 = vsub.f32 %v165, %v166
    %v168 = vand.u32 %v167, 4294901760
    %169 = vmatprep.subr.mxu0 %v168
    %v170 = vand.u32 %v65, 4294901760
    %v171 = vsub.f32 %v65, %v170
    %v172 = vand.u32 %v171, 4294901760
    %v173 = vsub.f32 %v171, %v172
    %v174 = vand.u32 %v173, 4294901760
    %175 = vmatpush1.xpose.msra.mxu0 %v174
    %176 = vmatprep.subr.mxu0 0.0
    %177 = vmatpush1.xpose.msra.mxu0 0.0
    %178 = vmatprep.subr.mxu0 0.0
    %179 = vmatpush1.xpose.msra.mxu0 0.0
    %180 = vmatprep.subr.mxu0 0.0
    %181 = vmatpush1.xpose.msra.mxu0 0.0
    %182 = vmatprep.subr.mxu0 0.0
    %183 = vmatpush1.xpose.msra.mxu0 0.0
    %184 = vmatprep.subr.mxu0 0.0
    %185 = vmatpush1.xpose.msra.mxu0 0.0
    %186 = vmatprep.subr.mxu0 0.0
    %187 = vmatpush1.xpose.msra.mxu0 0.0
    %188 = vmatprep.subr.mxu0 0.0
    %189 = vmatpush1.xpose.msra.mxu0 0.0
    %190 = vmatprep.subr.mxu0 0.0
    %191 = vmatpush1.xpose.msra.mxu0 0.0
    %192 = vmatprep.subr.mxu0 0.0
    %193 = vmatpush1.xpose.msra.mxu0 0.0
    %194 = vmatprep.subr.mxu0 0.0
    %195 = vmatpush1.xpose.msra.mxu0 0.0
    %196 = vmatprep.subr.mxu0 0.0
    %197 = vmatpush1.xpose.msra.mxu0 0.0
    %198 = vmatprep.subr.mxu0 0.0
    %199 = vmatpush1.xpose.msra.mxu0 0.0
    %200 = vmatprep.subr.mxu0 0.0
    %201 = vmatpush1.xpose.msra.mxu0 0.0
    %202 = vmatprep.subr.mxu0 0.0
    %203 = vmatpush1.xpose.msra.mxu0 0.0
    %204 = vmatprep.subr.mxu0 0.0
    %205 = vmatpush1.xpose.msra.mxu0 0.0
    %206 = vmatprep.subr.mxu0 0.0
    %207 = vmatpush1.xpose.msra.mxu0 0.0
    %208 = vmatprep.subr.mxu0 0.0
    %209 = vmatpush1.xpose.msra.mxu0 0.0
    %210 = vmatprep.subr.mxu0 0.0
    %211 = vmatpush1.xpose.msra.mxu0 0.0
    %212 = vmatprep.subr.mxu0 0.0
    %213 = vmatpush1.xpose.msra.mxu0 0.0
    %214 = vmatprep.subr.mxu0 0.0
    %215 = vmatpush1.xpose.msra.mxu0 0.0
    %216 = vmatprep.subr.mxu0 0.0
    %217 = vmatpush1.xpose.msra.mxu0 0.0
    %218 = vmatprep.subr.mxu0 0.0
    %219 = vmatpush1.xpose.msra.mxu0 0.0
    %220 = vmatprep.subr.mxu0 0.0
    %221 = vmatpush1.xpose.msra.mxu0 0.0
    %222 = vmatprep.subr.mxu0 0.0
    %223 = vmatpush1.xpose.msra.mxu0 0.0
    %224 = vmatprep.subr.mxu0 0.0
    %225 = vmatpush1.xpose.msra.mxu0 0.0
    %226 = vmatprep.subr.mxu0 0.0
    %227 = vmatpush1.xpose.msra.mxu0 0.0
    %228 = vmatprep.subr.mxu0 0.0
    %229 = vmatpush1.xpose.msra.mxu0 0.0
    %230 = vmatprep.subr.mxu0 0.0
    %231 = vmatpush1.xpose.msra.mxu0 0.0
    %232 = vmatprep.subr.mxu0 0.0
    %233 = vmatpush1.xpose.msra.mxu0 0.0
    %234 = vmatprep.subr.mxu0 0.0
    %235 = vmatpush1.xpose.msra.mxu0 0.0
    %v236 = vand.u32 %v36, 4294901760
    %237 = vmatprep.mubr.f32.mxu0 %v236
    %v238 = vand.u32 %v35, 4294901760
    %239 = vmatmul.mubr.f32.gmra.mrb[0].mxu0 %v238
    %v240 = vpop.f32.mrb[0].mxu0
    %v241 = vadd.f32 %v149, %v240
    %v242 = vpop.f32.mrb[0].mxu0
    %243 = vdwg.mxu0
    %v244 = vand.u32 %v64, 4294901760
    %v245 = vsub.f32 %v64, %v244
    %246 = vmatprep.subr.mxu0 %v245
    %v247 = vand.u32 %v63, 4294901760
    %v248 = vsub.f32 %v63, %v247
    %249 = vmatpush1.xpose.msra.mxu0 %v248
    %v250 = vand.u32 %v66, 4294901760
    %v251 = vsub.f32 %v66, %v250
    %252 = vmatprep.subr.mxu0 %v251
    %v253 = vand.u32 %v65, 4294901760
    %v254 = vsub.f32 %v65, %v253
    %255 = vmatpush1.xpose.msra.mxu0 %v254
    %256 = vmatprep.subr.mxu0 0.0
    %257 = vmatpush1.xpose.msra.mxu0 0.0
    %258 = vmatprep.subr.mxu0 0.0
    %259 = vmatpush1.xpose.msra.mxu0 0.0
    %260 = vmatprep.subr.mxu0 0.0
    %261 = vmatpush1.xpose.msra.mxu0 0.0
    %262 = vmatprep.subr.mxu0 0.0
    %263 = vmatpush1.xpose.msra.mxu0 0.0
    %264 = vmatprep.subr.mxu0 0.0
    %265 = vmatpush1.xpose.msra.mxu0 0.0
    %266 = vmatprep.subr.mxu0 0.0
    %267 = vmatpush1.xpose.msra.mxu0 0.0
    %268 = vmatprep.subr.mxu0 0.0
    %269 = vmatpush1.xpose.msra.mxu0 0.0
    %270 = vmatprep.subr.mxu0 0.0
    %271 = vmatpush1.xpose.msra.mxu0 0.0
    %272 = vmatprep.subr.mxu0 0.0
    %273 = vmatpush1.xpose.msra.mxu0 0.0
    %274 = vmatprep.subr.mxu0 0.0
    %275 = vmatpush1.xpose.msra.mxu0 0.0
    %276 = vmatprep.subr.mxu0 0.0
    %277 = vmatpush1.xpose.msra.mxu0 0.0
    %278 = vmatprep.subr.mxu0 0.0
    %279 = vmatpush1.xpose.msra.mxu0 0.0
    %280 = vmatprep.subr.mxu0 0.0
    %281 = vmatpush1.xpose.msra.mxu0 0.0
    %282 = vmatprep.subr.mxu0 0.0
    %283 = vmatpush1.xpose.msra.mxu0 0.0
    %284 = vmatprep.subr.mxu0 0.0
    %285 = vmatpush1.xpose.msra.mxu0 0.0
    %286 = vmatprep.subr.mxu0 0.0
    %287 = vmatpush1.xpose.msra.mxu0 0.0
    %288 = vmatprep.subr.mxu0 0.0
    %289 = vmatpush1.xpose.msra.mxu0 0.0
    %290 = vmatprep.subr.mxu0 0.0
    %291 = vmatpush1.xpose.msra.mxu0 0.0
    %292 = vmatprep.subr.mxu0 0.0
    %293 = vmatpush1.xpose.msra.mxu0 0.0
    %294 = vmatprep.subr.mxu0 0.0
    %295 = vmatpush1.xpose.msra.mxu0 0.0
    %296 = vmatprep.subr.mxu0 0.0
    %297 = vmatpush1.xpose.msra.mxu0 0.0
    %298 = vmatprep.subr.mxu0 0.0
    %299 = vmatpush1.xpose.msra.mxu0 0.0
    %300 = vmatprep.subr.mxu0 0.0
    %301 = vmatpush1.xpose.msra.mxu0 0.0
    %302 = vmatprep.subr.mxu0 0.0
    %303 = vmatpush1.xpose.msra.mxu0 0.0
    %304 = vmatprep.subr.mxu0 0.0
    %305 = vmatpush1.xpose.msra.mxu0 0.0
    %306 = vmatprep.subr.mxu0 0.0
    %307 = vmatpush1.xpose.msra.mxu0 0.0
    %308 = vmatprep.subr.mxu0 0.0
    %309 = vmatpush1.xpose.msra.mxu0 0.0
    %310 = vmatprep.subr.mxu0 0.0
    %311 = vmatpush1.xpose.msra.mxu0 0.0
    %312 = vmatprep.subr.mxu0 0.0
    %313 = vmatpush1.xpose.msra.mxu0 0.0
    %314 = vmatprep.subr.mxu0 0.0
    %315 = vmatpush1.xpose.msra.mxu0 0.0
    %v316 = vand.u32 %v36, 4294901760
    %v317 = vsub.f32 %v36, %v316
    %318 = vmatprep.mubr.f32.mxu0 %v317
    %v319 = vand.u32 %v35, 4294901760
    %v320 = vsub.f32 %v35, %v319
    %321 = vmatmul.mubr.f32.gmra.mrb[0].mxu0 %v320
    %v322 = vpop.f32.mrb[0].mxu0
    %v323 = vadd.f32 %v241, %v322
    %v324 = vpop.f32.mrb[0].mxu0
    %325 = vdwg.mxu0
    %v326 = vand.u32 %v64, 4294901760
    %327 = vmatprep.subr.mxu0 %v326
    %v328 = vand.u32 %v63, 4294901760
    %329 = vmatpush1.xpose.msra.mxu0 %v328
    %v330 = vand.u32 %v66, 4294901760
    %331 = vmatprep.subr.mxu0 %v330
    %v332 = vand.u32 %v65, 4294901760
    %333 = vmatpush1.xpose.msra.mxu0 %v332
    %334 = vmatprep.subr.mxu0 0.0
    %335 = vmatpush1.xpose.msra.mxu0 0.0
    %336 = vmatprep.subr.mxu0 0.0
    %337 = vmatpush1.xpose.msra.mxu0 0.0
    %338 = vmatprep.subr.mxu0 0.0
    %339 = vmatpush1.xpose.msra.mxu0 0.0
    %340 = vmatprep.subr.mxu0 0.0
    %341 = vmatpush1.xpose.msra.mxu0 0.0
    %342 = vmatprep.subr.mxu0 0.0
    %343 = vmatpush1.xpose.msra.mxu0 0.0
    %344 = vmatprep.subr.mxu0 0.0
    %345 = vmatpush1.xpose.msra.mxu0 0.0
    %346 = vmatprep.subr.mxu0 0.0
    %347 = vmatpush1.xpose.msra.mxu0 0.0
    %348 = vmatprep.subr.mxu0 0.0
    %349 = vmatpush1.xpose.msra.mxu0 0.0
    %350 = vmatprep.subr.mxu0 0.0
    %351 = vmatpush1.xpose.msra.mxu0 0.0
    %352 = vmatprep.subr.mxu0 0.0
    %353 = vmatpush1.xpose.msra.mxu0 0.0
    %354 = vmatprep.subr.mxu0 0.0
    %355 = vmatpush1.xpose.msra.mxu0 0.0
    %356 = vmatprep.subr.mxu0 0.0
    %357 = vmatpush1.xpose.msra.mxu0 0.0
    %358 = vmatprep.subr.mxu0 0.0
    %359 = vmatpush1.xpose.msra.mxu0 0.0
    %360 = vmatprep.subr.mxu0 0.0
    %361 = vmatpush1.xpose.msra.mxu0 0.0
    %362 = vmatprep.subr.mxu0 0.0
    %363 = vmatpush1.xpose.msra.mxu0 0.0
    %364 = vmatprep.subr.mxu0 0.0
    %365 = vmatpush1.xpose.msra.mxu0 0.0
    %366 = vmatprep.subr.mxu0 0.0
    %367 = vmatpush1.xpose.msra.mxu0 0.0
    %368 = vmatprep.subr.mxu0 0.0
    %369 = vmatpush1.xpose.msra.mxu0 0.0
    %370 = vmatprep.subr.mxu0 0.0
    %371 = vmatpush1.xpose.msra.mxu0 0.0
    %372 = vmatprep.subr.mxu0 0.0
    %373 = vmatpush1.xpose.msra.mxu0 0.0
    %374 = vmatprep.subr.mxu0 0.0
    %375 = vmatpush1.xpose.msra.mxu0 0.0
    %376 = vmatprep.subr.mxu0 0.0
    %377 = vmatpush1.xpose.msra.mxu0 0.0
    %378 = vmatprep.subr.mxu0 0.0
    %379 = vmatpush1.xpose.msra.mxu0 0.0
    %380 = vmatprep.subr.mxu0 0.0
    %381 = vmatpush1.xpose.msra.mxu0 0.0
    %382 = vmatprep.subr.mxu0 0.0
    %383 = vmatpush1.xpose.msra.mxu0 0.0
    %384 = vmatprep.subr.mxu0 0.0
    %385 = vmatpush1.xpose.msra.mxu0 0.0
    %386 = vmatprep.subr.mxu0 0.0
    %387 = vmatpush1.xpose.msra.mxu0 0.0
    %388 = vmatprep.subr.mxu0 0.0
    %389 = vmatpush1.xpose.msra.mxu0 0.0
    %390 = vmatprep.subr.mxu0 0.0
    %391 = vmatpush1.xpose.msra.mxu0 0.0
    %392 = vmatprep.subr.mxu0 0.0
    %393 = vmatpush1.xpose.msra.mxu0 0.0
    %v394 = vand.u32 %v36, 4294901760
    %v395 = vsub.f32 %v36, %v394
    %v396 = vand.u32 %v395, 4294901760
    %397 = vmatprep.mubr.f32.mxu0 %v396
    %v398 = vand.u32 %v35, 4294901760
    %v399 = vsub.f32 %v35, %v398
    %v400 = vand.u32 %v399, 4294901760
    %401 = vmatmul.mubr.f32.gmra.mrb[0].mxu0 %v400
    %v402 = vpop.f32.mrb[0].mxu0
    %v403 = vadd.f32 %v323, %v402
    %v404 = vpop.f32.mrb[0].mxu0
    %405 = vdwg.mxu0
    %v406 = vand.u32 %v64, 4294901760
    %v407 = vsub.f32 %v64, %v406
    %v408 = vand.u32 %v407, 4294901760
    %409 = vmatprep.subr.mxu0 %v408
    %v410 = vand.u32 %v63, 4294901760
    %v411 = vsub.f32 %v63, %v410
    %v412 = vand.u32 %v411, 4294901760
    %413 = vmatpush1.xpose.msra.mxu0 %v412
    %v414 = vand.u32 %v66, 4294901760
    %v415 = vsub.f32 %v66, %v414
    %v416 = vand.u32 %v415, 4294901760
    %417 = vmatprep.subr.mxu0 %v416
    %v418 = vand.u32 %v65, 4294901760
    %v419 = vsub.f32 %v65, %v418
    %v420 = vand.u32 %v419, 4294901760
    %421 = vmatpush1.xpose.msra.mxu0 %v420
    %422 = vmatprep.subr.mxu0 0.0
    %423 = vmatpush1.xpose.msra.mxu0 0.0
    %424 = vmatprep.subr.mxu0 0.0
    %425 = vmatpush1.xpose.msra.mxu0 0.0
    %426 = vmatprep.subr.mxu0 0.0
    %427 = vmatpush1.xpose.msra.mxu0 0.0
    %428 = vmatprep.subr.mxu0 0.0
    %429 = vmatpush1.xpose.msra.mxu0 0.0
    %430 = vmatprep.subr.mxu0 0.0
    %431 = vmatpush1.xpose.msra.mxu0 0.0
    %432 = vmatprep.subr.mxu0 0.0
    %433 = vmatpush1.xpose.msra.mxu0 0.0
    %434 = vmatprep.subr.mxu0 0.0
    %435 = vmatpush1.xpose.msra.mxu0 0.0
    %436 = vmatprep.subr.mxu0 0.0
    %437 = vmatpush1.xpose.msra.mxu0 0.0
    %438 = vmatprep.subr.mxu0 0.0
    %439 = vmatpush1.xpose.msra.mxu0 0.0
    %440 = vmatprep.subr.mxu0 0.0
    %441 = vmatpush1.xpose.msra.mxu0 0.0
    %442 = vmatprep.subr.mxu0 0.0
    %443 = vmatpush1.xpose.msra.mxu0 0.0
    %444 = vmatprep.subr.mxu0 0.0
    %445 = vmatpush1.xpose.msra.mxu0 0.0
    %446 = vmatprep.subr.mxu0 0.0
    %447 = vmatpush1.xpose.msra.mxu0 0.0
    %448 = vmatprep.subr.mxu0 0.0
    %449 = vmatpush1.xpose.msra.mxu0 0.0
    %450 = vmatprep.subr.mxu0 0.0
    %451 = vmatpush1.xpose.msra.mxu0 0.0
    %452 = vmatprep.subr.mxu0 0.0
    %453 = vmatpush1.xpose.msra.mxu0 0.0
    %454 = vmatprep.subr.mxu0 0.0
    %455 = vmatpush1.xpose.msra.mxu0 0.0
    %456 = vmatprep.subr.mxu0 0.0
    %457 = vmatpush1.xpose.msra.mxu0 0.0
    %458 = vmatprep.subr.mxu0 0.0
    %459 = vmatpush1.xpose.msra.mxu0 0.0
    %460 = vmatprep.subr.mxu0 0.0
    %461 = vmatpush1.xpose.msra.mxu0 0.0
    %462 = vmatprep.subr.mxu0 0.0
    %463 = vmatpush1.xpose.msra.mxu0 0.0
    %464 = vmatprep.subr.mxu0 0.0
    %465 = vmatpush1.xpose.msra.mxu0 0.0
    %466 = vmatprep.subr.mxu0 0.0
    %467 = vmatpush1.xpose.msra.mxu0 0.0
    %468 = vmatprep.subr.mxu0 0.0
    %469 = vmatpush1.xpose.msra.mxu0 0.0
    %470 = vmatprep.subr.mxu0 0.0
    %471 = vmatpush1.xpose.msra.mxu0 0.0
    %472 = vmatprep.subr.mxu0 0.0
    %473 = vmatpush1.xpose.msra.mxu0 0.0
    %474 = vmatprep.subr.mxu0 0.0
    %475 = vmatpush1.xpose.msra.mxu0 0.0
    %476 = vmatprep.subr.mxu0 0.0
    %477 = vmatpush1.xpose.msra.mxu0 0.0
    %478 = vmatprep.subr.mxu0 0.0
    %479 = vmatpush1.xpose.msra.mxu0 0.0
    %480 = vmatprep.subr.mxu0 0.0
    %481 = vmatpush1.xpose.msra.mxu0 0.0
    %v482 = vand.u32 %v36, 4294901760
    %483 = vmatprep.mubr.f32.mxu0 %v482
    %v484 = vand.u32 %v35, 4294901760
    %485 = vmatmul.mubr.f32.gmra.mrb[0].mxu0 %v484
    %v486 = vpop.f32.mrb[0].mxu0
    %v487 = vadd.f32 %v403, %v486
    %v488 = vpop.f32.mrb[0].mxu0
    %489 = vdwg.mxu0
    %v490 = vand.u32 %v64, 4294901760
    %491 = vmatprep.subr.mxu0 %v490
    %v492 = vand.u32 %v63, 4294901760
    %493 = vmatpush1.xpose.msra.mxu0 %v492
    %v494 = vand.u32 %v66, 4294901760
    %495 = vmatprep.subr.mxu0 %v494
    %v496 = vand.u32 %v65, 4294901760
    %497 = vmatpush1.xpose.msra.mxu0 %v496
    %498 = vmatprep.subr.mxu0 0.0
    %499 = vmatpush1.xpose.msra.mxu0 0.0
    %500 = vmatprep.subr.mxu0 0.0
    %501 = vmatpush1.xpose.msra.mxu0 0.0
    %502 = vmatprep.subr.mxu0 0.0
    %503 = vmatpush1.xpose.msra.mxu0 0.0
    %504 = vmatprep.subr.mxu0 0.0
    %505 = vmatpush1.xpose.msra.mxu0 0.0
    %506 = vmatprep.subr.mxu0 0.0
    %507 = vmatpush1.xpose.msra.mxu0 0.0
    %508 = vmatprep.subr.mxu0 0.0
    %509 = vmatpush1.xpose.msra.mxu0 0.0
    %510 = vmatprep.subr.mxu0 0.0
    %511 = vmatpush1.xpose.msra.mxu0 0.0
    %512 = vmatprep.subr.mxu0 0.0
    %513 = vmatpush1.xpose.msra.mxu0 0.0
    %514 = vmatprep.subr.mxu0 0.0
    %515 = vmatpush1.xpose.msra.mxu0 0.0
    %516 = vmatprep.subr.mxu0 0.0
    %517 = vmatpush1.xpose.msra.mxu0 0.0
    %518 = vmatprep.subr.mxu0 0.0
    %519 = vmatpush1.xpose.msra.mxu0 0.0
    %520 = vmatprep.subr.mxu0 0.0
    %521 = vmatpush1.xpose.msra.mxu0 0.0
    %522 = vmatprep.subr.mxu0 0.0
    %523 = vmatpush1.xpose.msra.mxu0 0.0
    %524 = vmatprep.subr.mxu0 0.0
    %525 = vmatpush1.xpose.msra.mxu0 0.0
    %526 = vmatprep.subr.mxu0 0.0
    %527 = vmatpush1.xpose.msra.mxu0 0.0
    %528 = vmatprep.subr.mxu0 0.0
    %529 = vmatpush1.xpose.msra.mxu0 0.0
    %530 = vmatprep.subr.mxu0 0.0
    %531 = vmatpush1.xpose.msra.mxu0 0.0
    %532 = vmatprep.subr.mxu0 0.0
    %533 = vmatpush1.xpose.msra.mxu0 0.0
    %534 = vmatprep.subr.mxu0 0.0
    %535 = vmatpush1.xpose.msra.mxu0 0.0
    %536 = vmatprep.subr.mxu0 0.0
    %537 = vmatpush1.xpose.msra.mxu0 0.0
    %538 = vmatprep.subr.mxu0 0.0
    %539 = vmatpush1.xpose.msra.mxu0 0.0
    %540 = vmatprep.subr.mxu0 0.0
    %541 = vmatpush1.xpose.msra.mxu0 0.0
    %542 = vmatprep.subr.mxu0 0.0
    %543 = vmatpush1.xpose.msra.mxu0 0.0
    %544 = vmatprep.subr.mxu0 0.0
    %545 = vmatpush1.xpose.msra.mxu0 0.0
    %546 = vmatprep.subr.mxu0 0.0
    %547 = vmatpush1.xpose.msra.mxu0 0.0
    %548 = vmatprep.subr.mxu0 0.0
    %549 = vmatpush1.xpose.msra.mxu0 0.0
    %550 = vmatprep.subr.mxu0 0.0
    %551 = vmatpush1.xpose.msra.mxu0 0.0
    %552 = vmatprep.subr.mxu0 0.0
    %553 = vmatpush1.xpose.msra.mxu0 0.0
    %554 = vmatprep.subr.mxu0 0.0
    %555 = vmatpush1.xpose.msra.mxu0 0.0
    %556 = vmatprep.subr.mxu0 0.0
    %557 = vmatpush1.xpose.msra.mxu0 0.0
    %v558 = vand.u32 %v36, 4294901760
    %559 = vmatprep.mubr.f32.mxu0 %v558
    %v560 = vand.u32 %v35, 4294901760
    %561 = vmatmul.mubr.f32.gmra.mrb[0].mxu0 %v560
    %v562 = vpop.f32.mrb[0].mxu0
    %v563 = vadd.f32 %v487, %v562
    %v564 = vpop.f32.mrb[0].mxu0
    %565 = vdwg.mxu0
    %v566 = vadd.f32 %v67, %v563
    %vm567 = vcmask 130048
    %568 = vst.msk [vmem:[#allocation5] sm:$0xff] %vm567, %v566
    // Predicated region
    $region22: #{tpu_custom_call.1} parent=1 // pred_check
      _
    $region23: #{tpu_custom_call.1} parent=1 // pred_check_branch
      %570 = sbr.rel (0) target = $region25
    $region24: #{tpu_custom_call.1} parent=1 // pred_region
      %s572 = ssub.s32 128, 128
      %573 = vsyncadd [#allocation4], %s572
      %s575 = sshll.u32 [#allocation5], 4
      %s576 = int_to_ptr.vmem [resolvable:$true] %s575
      %578 = dma.vmem_to_hbm [thread:$0]  %s576, 128, %s3, [#allocation4]
    $region25: #{tpu_custom_call.1} parent=1 // pred_fallthru
      _
    // Predicated region
    $region26: #{tpu_custom_call.1} parent=1 // pred_check
      _
    $region27: #{tpu_custom_call.1} parent=1 // pred_check_branch
      %580 = sbr.rel (0) target = $region29
    $region28: #{tpu_custom_call.1} parent=1 // pred_region
      %581 = dma.done [#allocation4], 128
    $region29: #{tpu_custom_call.1} parent=1 // pred_fallthru
      _
    %582 = vsyncpa [#allocation3], 1
    %583 = vsyncpa [#allocation4], 1

</llo_original>
